<compile_context>
chip_gen: v7x
topology: tpu7x:2x2x1
jax: 0.10.0
libtpu: 0.0.40
codegen_flags: <defaults>
</compile_context>

<pallas_src>
import functools

import jax
import jax.numpy as jnp
from jax.experimental import pallas as pl
from jax.experimental.pallas import tpu as pltpu


def _round_up(x, m):
    return (x + m - 1) // m * m


def default_dtypes():
    """bf16 weights everywhere; bf16 epilogue only where the VPU has native
    bf16 (v6e / v7x).  Older chips (v5e and earlier) keep an f32 epilogue."""
    kind = jax.devices()[0].device_kind.lower()
    has_bf16_vpu = not any(t in kind for t in ("v2", "v3", "v4", "v5"))
    return jnp.bfloat16, (jnp.bfloat16 if has_bf16_vpu else jnp.float32)


# ----------------------------------------------------------------------------- kernel
def _actor_kernel(x_ref, w1_ref, w23_ref, b_ref, out_ref, *, H, A_pad, max_action):
    """Fused 3-layer MLP.  Matmuls on the MXU; the bias/relu/tanh epilogue runs
    in the bias dtype (bf16 on v6e/v7x, f32 on v5e)."""
    w_dtype = w1_ref.dtype        # MXU input dtype (bf16 or f32)
    acc_dtype = b_ref.dtype       # epilogue dtype (bf16 on v6e/v7x, f32 on v5e)

    x = x_ref[...].astype(w_dtype)

    # Layer 1: (tb, S) @ (S, H)
    h1 = jnp.dot(x, w1_ref[...], preferred_element_type=acc_dtype)
    h1 = jnp.maximum(h1 + b_ref[:, 0:H], 0.0).astype(w_dtype)

    # Layer 2 -- W2 is the first H lanes of the packed W23 slab (static,
    # 128-lane-aligned slice: free).
    h2 = jnp.dot(h1, w23_ref[:, 0:H], preferred_element_type=acc_dtype)
    h2 = jnp.maximum(h2 + b_ref[:, H:2 * H], 0.0).astype(w_dtype)

    # Output head -- zero-padded to A_pad (multiple of 128) so the store is a
    # single unmasked lane-dense slab.
    a = jnp.dot(h2, w23_ref[:, H:H + A_pad], preferred_element_type=acc_dtype)
    a = a + b_ref[:, 2 * H:2 * H + A_pad]
    out_ref[...] = (max_action * jnp.tanh(a)).astype(out_ref.dtype)


# ----------------------------------------------------------------------------- params
def init_actor_params(key, state_dim, action_dim, hidden=256):
    """PyTorch nn.Linear default init (U(-1/sqrt(fan_in), 1/sqrt(fan_in)));
    weights stored transposed, i.e. (in, out), so the kernel computes x @ W."""
    def linear(k, fan_in, fan_out):
        kw, kb = jax.random.split(k)
        lim = 1.0 / (fan_in ** 0.5)
        w = jax.random.uniform(kw, (fan_in, fan_out), jnp.float32, -lim, lim)
        b = jax.random.uniform(kb, (1, fan_out), jnp.float32, -lim, lim)
        return w, b

    k1, k2, k3 = jax.random.split(key, 3)
    w1, b1 = linear(k1, state_dim, hidden)
    w2, b2 = linear(k2, hidden, hidden)
    w3, b3 = linear(k3, hidden, action_dim)
    return (w1, b1, w2, b2, w3, b3)


def pack_actor_params(params, weight_dtype=jnp.bfloat16, acc_dtype=jnp.float32):
    """One-time packing:
      * pad the action head to a 128-lane multiple (lane-dense unmasked store),
      * fuse W2||W3 and all biases into single slabs (7 -> 4 per-call DMAs),
      * cast weights to `weight_dtype` (bf16 halves the dominant DMA) and the
        biases to `acc_dtype` (the kernel's epilogue dtype)."""
    w1, b1, w2, b2, w3, b3 = params
    H = w2.shape[0]
    A = w3.shape[1]
    A_pad = _round_up(A, 128)

    w3p = jnp.pad(w3, ((0, 0), (0, A_pad - A)))
    b3p = jnp.pad(b3, ((0, 0), (0, A_pad - A)))

    return dict(
        w1=w1.astype(weight_dtype),                                       # (S, H)
        w23=jnp.concatenate([w2, w3p], axis=1).astype(weight_dtype),      # (H, H+A_pad)
        bias=jnp.concatenate([b1, b2, b3p], axis=1).astype(acc_dtype),    # (1, 2H+A_pad)
        hidden=H, action_dim=A, A_pad=A_pad)


# ----------------------------------------------------------------------------- wrapper
def actor_forward(x, packed, max_action, *, tile_b=512, out_dtype=jnp.float32,
                  return_padded=False, dimension_semantics=("parallel",)):
    """x: (B, state_dim) f32 -> (B, action_dim) `out_dtype`.

    tile_b: batch tile (sweep 256-512 for training batches; small B collapses
            to a single grid step automatically).
    return_padded: return the raw (B_pad, A_pad) lane-dense slab and let the
            consumer slice (cheapest HBM writeback path).
    dimension_semantics: pass (pltpu.CORE_PARALLEL,) on v7x if xprof shows one
            TensorCore idle on the batch grid."""
    w1, w23, bias = packed["w1"], packed["w23"], packed["bias"]
    H, A, A_pad = packed["hidden"], packed["action_dim"], packed["A_pad"]
    B, S = x.shape

    # Batch tile: multiple of 8 sublanes; pad B up to a tile multiple if needed.
    tb = min(tile_b, _round_up(B, 8))
    B_pad = _round_up(B, tb)
    if B_pad != B:
        x = jnp.pad(x, ((0, B_pad - B), (0, 0)))
    nb = B_pad // tb

    kernel = functools.partial(_actor_kernel, H=H, A_pad=A_pad,
                               max_action=float(max_action))

    flops = 2 * B_pad * (S * H + H * H + H * A_pad)
    bytes_accessed = (x.size * x.dtype.itemsize
                      + w1.size * w1.dtype.itemsize
                      + w23.size * w23.dtype.itemsize
                      + bias.size * bias.dtype.itemsize
                      + B_pad * A_pad * jnp.dtype(out_dtype).itemsize)

    out = pl.pallas_call(
        kernel,
        out_shape=jax.ShapeDtypeStruct((B_pad, A_pad), out_dtype),
        grid_spec=pltpu.PrefetchScalarGridSpec(
            num_scalar_prefetch=0,
            grid=(nb,),
            in_specs=[
                pl.BlockSpec((tb, S), lambda i: (i, 0)),             # activations stream
                pl.BlockSpec((S, H), lambda i: (0, 0)),              # weights: fetched once,
                pl.BlockSpec((H, H + A_pad), lambda i: (0, 0)),      # VMEM-resident across
                pl.BlockSpec((1, 2 * H + A_pad), lambda i: (0, 0)),  # all batch tiles
            ],
            out_specs=pl.BlockSpec((tb, A_pad), lambda i: (i, 0)),
        ),
        compiler_params=pltpu.CompilerParams(
            dimension_semantics=tuple(dimension_semantics)),
        cost_estimate=pl.CostEstimate(
            flops=flops,
            transcendentals=B_pad * A_pad,
            bytes_accessed=bytes_accessed),
    )(x, w1, w23, bias)

    if return_padded:
        return out
    # Call under jax.jit so this de-pad slice fuses instead of re-reading the slab.
    return out[:B, :A]


# ----------------------------------------------------------------------------- reference
def reference_forward(x, params, max_action):
    w1, b1, w2, b2, w3, b3 = params
    h1 = jnp.maximum(x @ w1 + b1, 0.0)
    h2 = jnp.maximum(h1 @ w2 + b2, 0.0)
    return max_action * jnp.tanh(h2 @ w3 + b3)


if __name__ == "__main__":
    state_dim, action_dim, hidden = 16, 8, 256   # hidden=256 is fixed by the module
    max_action = 2.0
    batch = 16

    key = jax.random.PRNGKey(0)
    k_param, k_state = jax.random.split(key)
    params = init_actor_params(k_param, state_dim, action_dim, hidden)
    x = jax.random.normal(k_state, (batch, state_dim), jnp.float32)
    ref = reference_forward(x, params, max_action)

    # 1) f32 weights + f32 epilogue, tile_b=8 -> grid of 2 batch tiles
    #    (exercises the pipelined/parallel multi-tile path): strict check.
    packed_f32 = pack_actor_params(params, weight_dtype=jnp.float32,
                                   acc_dtype=jnp.float32)
    fwd_f32 = jax.jit(lambda s: actor_forward(s, packed_f32, max_action, tile_b=8))
    out = jax.block_until_ready(fwd_f32(x))
    assert out.shape == (batch, action_dim), out.shape
    assert jnp.allclose(out, ref, atol=1e-4, rtol=1e-4), \
        float(jnp.max(jnp.abs(out - ref)))

    # 2) Hardware-default fast path (bf16 weights; bf16 epilogue on v6e/v7x,
    #    f32 epilogue on v5e), default tile_b=512, non-multiple batch (tests
    #    batch padding + single-step fallback): looser tolerance vs f32 ref.
    w_dt, a_dt = default_dtypes()
    packed_fast = pack_actor_params(params, weight_dtype=w_dt, acc_dtype=a_dt)
    xb = jax.random.normal(key, (300, state_dim), jnp.float32)
    refb = reference_forward(xb, params, max_action)
    fwd_fast = jax.jit(lambda s: actor_forward(s, packed_fast, max_action))
    outb = jax.block_until_ready(fwd_fast(xb))
    assert outb.shape == (300, action_dim), outb.shape
    assert jnp.allclose(outb, refb, atol=7e-2, rtol=5e-2), \
        float(jnp.max(jnp.abs(outb - refb)))

    print("KERNEL_OK")
</pallas_src>

<mosaic_0001>
module attributes {stable_mosaic.version = 11 : i64} {
  func.func @_actor_kernel(%arg0: i32, %arg1: memref<8x16xf32, #tpu.memory_space<vmem>>, %arg2: memref<16x256xf32, #tpu.memory_space<vmem>>, %arg3: memref<256x384xf32, #tpu.memory_space<vmem>>, %arg4: memref<1x640xf32, #tpu.memory_space<vmem>>, %arg5: memref<8x128xf32, #tpu.memory_space<vmem>>) attributes {dimension_semantics = [#tpu.dimension_semantics<parallel>], iteration_bounds = array<i64: 2>, scalar_prefetch = 0 : i64, scratch_operands = 0 : i64, tpu.core_type = #tpu.core_type<tc>, window_params = [{transform_indices = @transform_0, window_bounds = array<i64: 8, 16>}, {pipeline_mode = #tpu.pipeline_mode<synchronous>, transform_indices = @transform_1, window_bounds = array<i64: 16, 256>}, {pipeline_mode = #tpu.pipeline_mode<synchronous>, transform_indices = @transform_2, window_bounds = array<i64: 256, 384>}, {pipeline_mode = #tpu.pipeline_mode<synchronous>, transform_indices = @transform_3, window_bounds = array<i64: 1, 640>}, {transform_indices = @transform_4, window_bounds = array<i64: 8, 128>}]} {
    %c0 = arith.constant 0 : index
    %c0_0 = arith.constant 0 : index
    %0 = vector.load %arg1[%c0, %c0_0] : memref<8x16xf32, #tpu.memory_space<vmem>>, vector<8x16xf32>
    %c0_1 = arith.constant 0 : index
    %c0_2 = arith.constant 0 : index
    %1 = vector.load %arg2[%c0_1, %c0_2] : memref<16x256xf32, #tpu.memory_space<vmem>>, vector<16x256xf32>
    %cst = arith.constant dense<0.000000e+00> : vector<8x256xf32>
    %2 = tpu.matmul %0, %1, %cst {dimension_numbers = #tpu.dot_dimension_numbers<[1], [0], [0], [1], [0, 0, 1, 1], [], []>} : vector<8x16xf32>, vector<16x256xf32>, vector<8x256xf32> -> vector<8x256xf32>
    %c0_3 = arith.constant 0 : index
    %c0_4 = arith.constant 0 : index
    %3 = vector.load %arg4[%c0_3, %c0_4] : memref<1x640xf32, #tpu.memory_space<vmem>>, vector<1x256xf32>
    %4 = vector.broadcast %3 : vector<1x256xf32> to vector<8x256xf32>
    %5 = arith.addf %2, %4 : vector<8x256xf32>
    %cst_5 = arith.constant 0.000000e+00 : f32
    %6 = vector.broadcast %cst_5 : f32 to vector<8x256xf32>
    %7 = arith.maximumf %5, %6 : vector<8x256xf32>
    %c0_6 = arith.constant 0 : index
    %c0_7 = arith.constant 0 : index
    %8 = vector.load %arg3[%c0_6, %c0_7] : memref<256x384xf32, #tpu.memory_space<vmem>>, vector<256x256xf32>
    %cst_8 = arith.constant dense<0.000000e+00> : vector<8x256xf32>
    %9 = tpu.matmul %7, %8, %cst_8 {dimension_numbers = #tpu.dot_dimension_numbers<[1], [0], [0], [1], [0, 0, 1, 1], [], []>} : vector<8x256xf32>, vector<256x256xf32>, vector<8x256xf32> -> vector<8x256xf32>
    %c0_9 = arith.constant 0 : index
    %c256 = arith.constant 256 : index
    %10 = vector.load %arg4[%c0_9, %c256] : memref<1x640xf32, #tpu.memory_space<vmem>>, vector<1x256xf32>
    %11 = vector.broadcast %10 : vector<1x256xf32> to vector<8x256xf32>
    %12 = arith.addf %9, %11 : vector<8x256xf32>
    %cst_10 = arith.constant 0.000000e+00 : f32
    %13 = vector.broadcast %cst_10 : f32 to vector<8x256xf32>
    %14 = arith.maximumf %12, %13 : vector<8x256xf32>
    %c0_11 = arith.constant 0 : index
    %c256_12 = arith.constant 256 : index
    %15 = vector.load %arg3[%c0_11, %c256_12] : memref<256x384xf32, #tpu.memory_space<vmem>>, vector<256x128xf32>
    %cst_13 = arith.constant dense<0.000000e+00> : vector<8x128xf32>
    %16 = tpu.matmul %14, %15, %cst_13 {dimension_numbers = #tpu.dot_dimension_numbers<[1], [0], [0], [1], [0, 0, 1, 1], [], []>} : vector<8x256xf32>, vector<256x128xf32>, vector<8x128xf32> -> vector<8x128xf32>
    %c0_14 = arith.constant 0 : index
    %c512 = arith.constant 512 : index
    %17 = vector.load %arg4[%c0_14, %c512] : memref<1x640xf32, #tpu.memory_space<vmem>>, vector<1x128xf32>
    %18 = vector.broadcast %17 : vector<1x128xf32> to vector<8x128xf32>
    %19 = arith.addf %16, %18 : vector<8x128xf32>
    %20 = math.tanh %19 : vector<8x128xf32>
    %cst_15 = arith.constant 2.000000e+00 : f32
    %21 = vector.broadcast %cst_15 : f32 to vector<8x128xf32>
    %22 = arith.mulf %21, %20 : vector<8x128xf32>
    %c0_16 = arith.constant 0 : index
    %c0_17 = arith.constant 0 : index
    %23 = vector.load %arg5[%c0_16, %c0_17] : memref<8x128xf32, #tpu.memory_space<vmem>>, vector<8x128xf32>
    tpu.vector_store %arg5[%c0_16, %c0_17], %22 {strides = array<i32>} : memref<8x128xf32, #tpu.memory_space<vmem>>, vector<8x128xf32>,
    return
  }
  func.func @transform_0(%arg0: i32) -> (i32, i32) {
    %c0_i32 = arith.constant 0 : i32
    %c0_i32_0 = arith.constant 0 : i32
    return %arg0, %c0_i32 : i32, i32
  }
  func.func @transform_1(%arg0: i32) -> (i32, i32) {
    %c0_i32 = arith.constant 0 : i32
    %c0_i32_0 = arith.constant 0 : i32
    %c0_i32_1 = arith.constant 0 : i32
    return %c0_i32, %c0_i32_0 : i32, i32
  }
  func.func @transform_2(%arg0: i32) -> (i32, i32) {
    %c0_i32 = arith.constant 0 : i32
    %c0_i32_0 = arith.constant 0 : i32
    %c0_i32_1 = arith.constant 0 : i32
    return %c0_i32, %c0_i32_0 : i32, i32
  }
  func.func @transform_3(%arg0: i32) -> (i32, i32) {
    %c0_i32 = arith.constant 0 : i32
    %c0_i32_0 = arith.constant 0 : i32
    %c0_i32_1 = arith.constant 0 : i32
    return %c0_i32, %c0_i32_0 : i32, i32
  }
  func.func @transform_4(%arg0: i32) -> (i32, i32) {
    %c0_i32 = arith.constant 0 : i32
    %c0_i32_0 = arith.constant 0 : i32
    return %arg0, %c0_i32 : i32, i32
  }
}

</mosaic_0001>

<llo_original>
// kernel: _lambda_.1
$region0: #{_lambda_.1}
  #allocation0 [shape = 'u32[]', space=smem, size = 0x4, offset = 0x4, fixed_abs, tag = 'smem constant byte address 0x4 - core index']
  #allocation1 [shape = 'u32[144,128]{1,0:T(1,128)}', space=vmem, size = 0x12000, scoped, tag = 'internal scratch']
  %s0 = inlined_call_operand.hbm [shape: f32[16,16], index: 0, kind: input, shape index: {}]
  %s1 = inlined_call_operand.hbm [shape: f32[16,256], index: 1, kind: input, shape index: {}]
  %s2 = inlined_call_operand.hbm [shape: f32[256,384], index: 2, kind: input, shape index: {}]
  %s3 = inlined_call_operand.vmem [shape: f32[1,640], index: 3, kind: input, shape index: {}]
  %s4 = inlined_call_operand.vmem [shape: f32[16,128], index: 4, kind: output, shape index: {}]
  %s5 = sld [smem:[#allocation0]]
  $region61: #{_lambda_.1} parent=0
    _
  %s7 = ssub.s32 1, %s5
  %s8 = scalar_select 0, %s7, %s5
  $region1: #{_lambda_.1} parent=0
    #allocation2 [shape = 'u8[8192]{0}', space=vmem, size = 0x2000, scoped, tag = 'input window, operand 0']
    #allocation3 [shape = 's32[2]{0}', space=sflag, size = 0x8, scoped, tag = 'scoped memory for _lambda_.1']
    #allocation4 [shape = 'u8[16384]{0}', space=vmem, size = 0x4000, scoped, tag = 'input window, operand 1, single buffered']
    #allocation5 [shape = 's32[1]{0}', space=sflag, size = 0x4, scoped, tag = 'scoped memory for _lambda_.1']
    #allocation6 [shape = 'u8[393216]{0}', space=vmem, size = 0x60000, scoped, tag = 'input window, operand 2, single buffered']
    %9 = vsyncpa [#allocation3], 0
    %s10 = scalar_lea.sflag [#allocation3], 1
    %11 = vsyncpa %s10, 0
    %12 = vsyncpa [#allocation5], 0
    loop: start=0, step=1, limit=4
    $region2: #{_lambda_.1} parent=1 // loop_pre_header
      _
    $region3: #{_lambda_.1} parent=1 // loop_header
      %s14 = sphi 0, %s18
      %p15 = scmp.ge.s32.totalorder %s14, 4
      %s24 = sphi 0, %s26
      %s27 = sphi 0, %s24
      %s28 = sphi 0, %s27
      %s44 = sphi 0, %s28
      %s48 = sphi 0, %s48
      %s50 = sphi 0, %s48
      %s51 = sphi 0, %s50
      %s65 = sphi 0, %s51
      %s69 = sphi 0, %s69
      %s71 = sphi 0, %s69
      %s72 = sphi 0, %s71
      %s86 = sphi 0, %s72
      %s90 = sphi 0, %s90
      %s92 = sphi 0, %s90
      %s93 = sphi 0, %s92
      %s107 = sphi 0, %s93
      %s113 = sphi 0, %s115
      %s116 = sphi 0, %s113
      %s117 = sphi 0, %s116
      %s133 = sphi 0, %s117
    $region4: #{_lambda_.1} parent=1 // loop_header_branch
      %17 = sbr.rel (%p15) target = $region8
    $region5: #{_lambda_.1} parent=1 // loop_body
      %s19 = ssub.s32 %s14, 1
      %s20 = ssub.s32 %s14, 2
      %s21 = sadd.s32 %s14, 1
      %s22 = ssub.s32 %s14, %s21
      %p23 = scmp.eq.s32.totalorder %s22, 0
      %s25 = sadd.s32 %s24, 1
      %s26 = scalar_select %p23, %s24, %s25
      %p29 = pneg %p23
      %p30 = scmp.eq.s32.totalorder %s14, 1
      %p31 = por %p29, %p30
      %p32 = scmp.ne.s32.totalorder %s24, %s27
      %p33 = scmp.eq.s32.totalorder %s14, 0
      %p34 = por %p32, %p33
      %p35 = scmp.ne.s32.totalorder %s24, %s27
      %p36 = scmp.eq.s32.totalorder %s19, 1
      %p37 = por %p35, %p36
      %p38 = scmp.ne.s32.totalorder %s27, %s28
      %p39 = scmp.eq.s32.totalorder %s19, 0
      %p40 = por %p38, %p39
      %p41 = scmp.ne.s32.totalorder %s27, %s28
      %p42 = scmp.eq.s32.totalorder %s20, 1
      %p43 = por %p41, %p42
      %p45 = scmp.ne.s32.totalorder %s28, %s44
      %p46 = scmp.eq.s32.totalorder %s20, 0
      %p47 = por %p45, %p46
      %s49 = sadd.s32 %s48, 1
      %p52 = scmp.eq.s32.totalorder %s14, 1
      %p53 = scmp.ne.s32.totalorder %s48, %s50
      %p54 = scmp.eq.s32.totalorder %s14, 0
      %p55 = por %p53, %p54
      %p56 = scmp.ne.s32.totalorder %s48, %s50
      %p57 = scmp.eq.s32.totalorder %s19, 1
      %p58 = por %p56, %p57
      %p59 = scmp.ne.s32.totalorder %s50, %s51
      %p60 = scmp.eq.s32.totalorder %s19, 0
      %p61 = por %p59, %p60
      %p62 = scmp.ne.s32.totalorder %s50, %s51
      %p63 = scmp.eq.s32.totalorder %s20, 1
      %p64 = por %p62, %p63
      %p66 = scmp.ne.s32.totalorder %s51, %s65
      %p67 = scmp.eq.s32.totalorder %s20, 0
      %p68 = por %p66, %p67
      %s70 = sadd.s32 %s69, 1
      %p73 = scmp.eq.s32.totalorder %s14, 1
      %p74 = scmp.ne.s32.totalorder %s69, %s71
      %p75 = scmp.eq.s32.totalorder %s14, 0
      %p76 = por %p74, %p75
      %p77 = scmp.ne.s32.totalorder %s69, %s71
      %p78 = scmp.eq.s32.totalorder %s19, 1
      %p79 = por %p77, %p78
      %p80 = scmp.ne.s32.totalorder %s71, %s72
      %p81 = scmp.eq.s32.totalorder %s19, 0
      %p82 = por %p80, %p81
      %p83 = scmp.ne.s32.totalorder %s71, %s72
      %p84 = scmp.eq.s32.totalorder %s20, 1
      %p85 = por %p83, %p84
      %p87 = scmp.ne.s32.totalorder %s72, %s86
      %p88 = scmp.eq.s32.totalorder %s20, 0
      %p89 = por %p87, %p88
      %s91 = sadd.s32 %s90, 1
      %p94 = scmp.eq.s32.totalorder %s14, 1
      %p95 = scmp.ne.s32.totalorder %s90, %s92
      %p96 = scmp.eq.s32.totalorder %s14, 0
      %p97 = por %p95, %p96
      %p98 = scmp.ne.s32.totalorder %s90, %s92
      %p99 = scmp.eq.s32.totalorder %s19, 1
      %p100 = por %p98, %p99
      %p101 = scmp.ne.s32.totalorder %s92, %s93
      %p102 = scmp.eq.s32.totalorder %s19, 0
      %p103 = por %p101, %p102
      %p104 = scmp.ne.s32.totalorder %s92, %s93
      %p105 = scmp.eq.s32.totalorder %s20, 1
      %p106 = por %p104, %p105
      %p108 = scmp.ne.s32.totalorder %s93, %s107
      %p109 = scmp.eq.s32.totalorder %s20, 0
      %p110 = por %p108, %p109
      %s111 = ssub.s32 %s14, %s21
      %p112 = scmp.eq.s32.totalorder %s111, 0
      %s114 = sadd.s32 %s113, 1
      %s115 = scalar_select %p112, %s113, %s114
      %p118 = pneg %p112
      %p119 = scmp.eq.s32.totalorder %s14, 1
      %p120 = por %p118, %p119
      %p121 = scmp.ne.s32.totalorder %s113, %s116
      %p122 = scmp.eq.s32.totalorder %s14, 0
      %p123 = por %p121, %p122
      %p124 = scmp.ne.s32.totalorder %s113, %s116
      %p125 = scmp.eq.s32.totalorder %s19, 1
      %p126 = por %p124, %p125
      %p127 = scmp.ne.s32.totalorder %s116, %s117
      %p128 = scmp.eq.s32.totalorder %s19, 0
      %p129 = por %p127, %p128
      %p130 = scmp.ne.s32.totalorder %s116, %s117
      %p131 = scmp.eq.s32.totalorder %s20, 1
      %p132 = por %p130, %p131
      %p134 = scmp.ne.s32.totalorder %s117, %s133
      %p135 = scmp.eq.s32.totalorder %s20, 0
      %p136 = por %p134, %p135
      %p137 = scmp.le.s32.totalorder 1, %s14
      %p138 = scmp.lt.s32.totalorder %s14, 3
      %p139 = pnand %p137, %p138
      %p140 = pneg %p139
      // Predicated region
      $region9: #{_lambda_.1} parent=5 // pred_check
        _
      $region10: #{_lambda_.1} parent=5 // pred_check_branch
        %142 = sbr.rel (%p139) target = $region12
      $region11: #{_lambda_.1} parent=5 // pred_region
        %s143 = ssub.s32 %s14, 1
        // Predicated region
        $region13: #{_lambda_.1} parent=11 // pred_check
          %p144 = pneg %p61
        $region14: #{_lambda_.1} parent=11 // pred_check_branch
          %146 = sbr.rel (%p144) target = $region16
        $region15: #{_lambda_.1} parent=11 // pred_region
          %s148 = ssub.s32 512, 512
          %149 = vsyncadd [#allocation5], %s148
          %s150 = sshll.u32 [#allocation4], 4
          %s151 = int_to_ptr.vmem [resolvable:$true] %s150
          %156 = dma.hbm_to_vmem [thread:$0]  %s1, 512, %s151, [#allocation5], 256, 256, 16
        $region16: #{_lambda_.1} parent=11 // pred_fallthru
          _
        // Predicated region
        $region17: #{_lambda_.1} parent=11 // pred_check
          %p157 = pneg %p82
        $region18: #{_lambda_.1} parent=11 // pred_check_branch
          %159 = sbr.rel (%p157) target = $region20
        $region19: #{_lambda_.1} parent=11 // pred_region
          %s161 = ssub.s32 12288, 12288
          %162 = vsyncadd [#allocation5], %s161
          %s163 = sshll.u32 [#allocation6], 4
          %s164 = int_to_ptr.vmem [resolvable:$true] %s163
          %169 = dma.hbm_to_vmem [thread:$0]  %s2, 12288, %s164, [#allocation5], 384, 384, 24
        $region20: #{_lambda_.1} parent=11 // pred_fallthru
          _
        // Predicated region
        $region21: #{_lambda_.1} parent=11 // pred_check
          %p170 = pneg %p103
        $region22: #{_lambda_.1} parent=11 // pred_check_branch
          %172 = sbr.rel (%p170) target = $region24
        $region23: #{_lambda_.1} parent=11 // pred_region
          _
        $region24: #{_lambda_.1} parent=11 // pred_fallthru
          _
      $region12: #{_lambda_.1} parent=5 // pred_fallthru
        _
      %p173 = scmp.lt.s32.totalorder %s14, 2
      // Predicated region
      $region25: #{_lambda_.1} parent=5 // pred_check
        %p174 = pneg %p173
      $region26: #{_lambda_.1} parent=5 // pred_check_branch
        %176 = sbr.rel (%p174) target = $region28
      $region27: #{_lambda_.1} parent=5 // pred_region
        // Predicated region
        $region29: #{_lambda_.1} parent=27 // pred_check
          %p177 = pneg %p34
        $region30: #{_lambda_.1} parent=27 // pred_check_branch
          %179 = sbr.rel (%p177) target = $region32
        $region31: #{_lambda_.1} parent=27 // pred_region
          %s180 = sand.u32 %s24, 1
          %s181 = scalar_lea.sflag [#allocation3], %s180
          %s182 = sand.u32 %s24, 1
          %s183 = smul.addr %s182, 8
          %s184 = scalar_lea.vmem [#allocation2], %s183
          %s186 = ssub.s32 128, 128
          %187 = vsyncadd %s181, %s186
          %s188 = smul.addr %s14, 128
          %s189 = scalar_lea.hbm %s0, %s188
          %s191 = sshll.u32 %s184, 4
          %s192 = int_to_ptr.vmem [resolvable:$true] %s191
          %194 = dma.hbm_to_vmem [thread:$0]  %s189, 128, %s192, %s181
        $region32: #{_lambda_.1} parent=27 // pred_fallthru
          _
      $region28: #{_lambda_.1} parent=5 // pred_fallthru
        _
      %p195 = scmp.le.s32.totalorder 1, %s14
      %p196 = scmp.lt.s32.totalorder %s14, 3
      %p197 = pnand %p195, %p196
      %p198 = pneg %p197
      // Predicated region
      $region33: #{_lambda_.1} parent=5 // pred_check
        _
      $region34: #{_lambda_.1} parent=5 // pred_check_branch
        %200 = sbr.rel (%p197) target = $region36
      $region35: #{_lambda_.1} parent=5 // pred_region
        %s201 = ssub.s32 %s14, 1
        %s202 = sand.u32 %s27, 1
        %s203 = scalar_lea.sflag [#allocation3], %s202
        %s204 = sand.u32 %s27, 1
        %s205 = smul.addr %s204, 8
        %s206 = scalar_lea.vmem [#allocation2], %s205
        // Predicated region
        $region37: #{_lambda_.1} parent=35 // pred_check
          %p207 = pneg %p40
        $region38: #{_lambda_.1} parent=35 // pred_check_branch
          %209 = sbr.rel (%p207) target = $region40
        $region39: #{_lambda_.1} parent=35 // pred_region
          %210 = dma.done %s203, 128
        $region40: #{_lambda_.1} parent=35 // pred_fallthru
          _
        // Predicated region
        $region41: #{_lambda_.1} parent=35 // pred_check
          %p211 = pneg %p61
        $region42: #{_lambda_.1} parent=35 // pred_check_branch
          %213 = sbr.rel (%p211) target = $region44
        $region43: #{_lambda_.1} parent=35 // pred_region
          %214 = dma.done [#allocation5], 512
        $region44: #{_lambda_.1} parent=35 // pred_fallthru
          _
        // Predicated region
        $region45: #{_lambda_.1} parent=35 // pred_check
          %p215 = pneg %p82
        $region46: #{_lambda_.1} parent=35 // pred_check_branch
          %217 = sbr.rel (%p215) target = $region48
        $region47: #{_lambda_.1} parent=35 // pred_region
          %218 = dma.done [#allocation5], 12288
        $region48: #{_lambda_.1} parent=35 // pred_fallthru
          _
        %s219 = sand.u32 %s27, 1
        %s220 = scalar_lea.sflag [#allocation3], %s219
        %s221 = sand.u32 %s27, 1
        %s222 = smul.addr %s221, 8
        %s223 = scalar_lea.vmem [#allocation2], %s222
        %p224 = pneg %p40
        %p225 = pneg %p37
        %p226 = pneg %p61
        %p227 = pneg %p58
        %p228 = pneg %p82
        %p229 = pneg %p79
        %p230 = pneg %p103
        %p231 = pneg %p100
        %p232 = pneg %p129
        %p233 = pneg %p126
        %p234 = scmp.lt.s32.totalorder %s19, 1
        %s235 = scalar_select %p234, %s19, 1
        %s236 = smul.addr %s235, 8
        %s237 = scalar_lea.vmem %s4, %s236
        %p238 = scmp.lt.s32.totalorder %s19, 1
        %s239 = scalar_select %p238, %s19, 1
        %s240 = smul.addr %s239, 8
        %s241 = scalar_lea.vmem %s4, %s240
        %v242 = vld [vmem:[%s206] sm:$0xff]
        %v243 = vld [vmem:[#allocation4] sm:$0xff]
        %v244 = vld [vmem:[#allocation4 + $0x8] sm:$0xff]
        %v245 = vld [vmem:[#allocation4 + $0x10] sm:$0xff]
        %v246 = vld [vmem:[#allocation4 + $0x18] sm:$0xff]
        %v247 = vld [vmem:[%s3] sm:$0x3]
        %v249 = vlaneseq
        %v250 = vshrl.u32 %v249, 7
        %v251 = vsub.s32 0, %v250
        %v252 = vrot.slane %v247, %v251
        %v253 = vlaneseq
        %v254 = vshrl.u32 %v253, 7
        %v255 = vsub.s32 1, %v254
        %v256 = vrot.slane %v247, %v255
        %vm259 = vcmask 130048
        %v261 = vsel %vm259, %v242, 0
        %263 = vmatprep.subr.mxu0 %v244
        %264 = vmatpush1.msra.mxu0 %v243
        %265 = vmatprep.subr.mxu0 %v246
        %266 = vmatpush1.msra.mxu0 %v245
        %267 = vmatprep.subr.mxu0 0.0
        %268 = vmatpush1.msra.mxu0 0.0
        %269 = vmatprep.subr.mxu0 0.0
        %270 = vmatpush1.msra.mxu0 0.0
        %271 = vmatprep.subr.mxu0 0.0
        %272 = vmatpush1.msra.mxu0 0.0
        %273 = vmatprep.subr.mxu0 0.0
        %274 = vmatpush1.msra.mxu0 0.0
        %275 = vmatprep.subr.mxu0 0.0
        %276 = vmatpush1.msra.mxu0 0.0
        %277 = vmatprep.subr.mxu0 0.0
        %278 = vmatpush1.msra.mxu0 0.0
        %279 = vmatprep.subr.mxu0 0.0
        %280 = vmatpush1.msra.mxu0 0.0
        %281 = vmatprep.subr.mxu0 0.0
        %282 = vmatpush1.msra.mxu0 0.0
        %283 = vmatprep.subr.mxu0 0.0
        %284 = vmatpush1.msra.mxu0 0.0
        %285 = vmatprep.subr.mxu0 0.0
        %286 = vmatpush1.msra.mxu0 0.0
        %287 = vmatprep.subr.mxu0 0.0
        %288 = vmatpush1.msra.mxu0 0.0
        %289 = vmatprep.subr.mxu0 0.0
        %290 = vmatpush1.msra.mxu0 0.0
        %291 = vmatprep.subr.mxu0 0.0
        %292 = vmatpush1.msra.mxu0 0.0
        %293 = vmatprep.subr.mxu0 0.0
        %294 = vmatpush1.msra.mxu0 0.0
        %295 = vmatprep.subr.mxu0 0.0
        %296 = vmatpush1.msra.mxu0 0.0
        %297 = vmatprep.subr.mxu0 0.0
        %298 = vmatpush1.msra.mxu0 0.0
        %299 = vmatprep.subr.mxu0 0.0
        %300 = vmatpush1.msra.mxu0 0.0
        %301 = vmatprep.subr.mxu0 0.0
        %302 = vmatpush1.msra.mxu0 0.0
        %303 = vmatprep.subr.mxu0 0.0
        %304 = vmatpush1.msra.mxu0 0.0
        %305 = vmatprep.subr.mxu0 0.0
        %306 = vmatpush1.msra.mxu0 0.0
        %307 = vmatprep.subr.mxu0 0.0
        %308 = vmatpush1.msra.mxu0 0.0
        %309 = vmatprep.subr.mxu0 0.0
        %310 = vmatpush1.msra.mxu0 0.0
        %311 = vmatprep.subr.mxu0 0.0
        %312 = vmatpush1.msra.mxu0 0.0
        %313 = vmatprep.subr.mxu0 0.0
        %314 = vmatpush1.msra.mxu0 0.0
        %315 = vmatprep.subr.mxu0 0.0
        %316 = vmatpush1.msra.mxu0 0.0
        %317 = vmatprep.subr.mxu0 0.0
        %318 = vmatpush1.msra.mxu0 0.0
        %319 = vmatprep.subr.mxu0 0.0
        %320 = vmatpush1.msra.mxu0 0.0
        %321 = vmatprep.subr.mxu0 0.0
        %322 = vmatpush1.msra.mxu0 0.0
        %323 = vmatprep.subr.mxu0 0.0
        %324 = vmatpush1.msra.mxu0 0.0
        %325 = vmatprep.subr.mxu0 0.0
        %326 = vmatpush1.msra.mxu0 0.0
        %327 = vmatprep.mubr.f32.mxu0 0.0
        %328 = vmatmul.mubr.f32.gmra.mrb[0].mxu0 %v261
        %v329 = vpop.f32.mrb[0].mxu0
        %v330 = vadd.f32 %v252, %v329
        %v331 = vpop.f32.mrb[0].mxu0
        %v332 = vadd.f32 %v256, %v331
        %333 = vdwg.mxu0
        %v334 = vmax.f32 %v330, 0.0
        %v335 = vmax.f32 %v332, 0.0
        %v336 = vld [vmem:[#allocation6] sm:$0xff]
        %v337 = vld [vmem:[#allocation6 + $0x8] sm:$0xff]
        %v338 = vld [vmem:[#allocation6 + $0x18] sm:$0xff]
        %v339 = vld [vmem:[#allocation6 + $0x20] sm:$0xff]
        %v340 = vld [vmem:[#allocation6 + $0x30] sm:$0xff]
        %v341 = vld [vmem:[#allocation6 + $0x38] sm:$0xff]
        %v342 = vld [vmem:[#allocation6 + $0x48] sm:$0xff]
        %v343 = vld [vmem:[#allocation6 + $0x50] sm:$0xff]
        %v344 = vld [vmem:[#allocation6 + $0x60] sm:$0xff]
        %v345 = vld [vmem:[#allocation6 + $0x68] sm:$0xff]
        %v346 = vld [vmem:[#allocation6 + $0x78] sm:$0xff]
        %v347 = vld [vmem:[#allocation6 + $0x80] sm:$0xff]
        %v348 = vld [vmem:[#allocation6 + $0x90] sm:$0xff]
        %v349 = vld [vmem:[#allocation6 + $0x98] sm:$0xff]
        %v350 = vld [vmem:[#allocation6 + $0xa8] sm:$0xff]
        %v351 = vld [vmem:[#allocation6 + $0xb0] sm:$0xff]
        %v352 = vld [vmem:[#allocation6 + $0xc0] sm:$0xff]
        %v353 = vld [vmem:[#allocation6 + $0xc8] sm:$0xff]
        %v354 = vld [vmem:[#allocation6 + $0xd8] sm:$0xff]
        %v355 = vld [vmem:[#allocation6 + $0xe0] sm:$0xff]
        %v356 = vld [vmem:[#allocation6 + $0xf0] sm:$0xff]
        %v357 = vld [vmem:[#allocation6 + $0xf8] sm:$0xff]
        %v358 = vld [vmem:[#allocation6 + $0x108] sm:$0xff]
        %v359 = vld [vmem:[#allocation6 + $0x110] sm:$0xff]
        %v360 = vld [vmem:[#allocation6 + $0x120] sm:$0xff]
        %v361 = vld [vmem:[#allocation6 + $0x128] sm:$0xff]
        %v362 = vld [vmem:[#allocation6 + $0x138] sm:$0xff]
        %v363 = vld [vmem:[#allocation6 + $0x140] sm:$0xff]
        %v364 = vld [vmem:[#allocation6 + $0x150] sm:$0xff]
        %v365 = vld [vmem:[#allocation6 + $0x158] sm:$0xff]
        %v366 = vld [vmem:[#allocation6 + $0x168] sm:$0xff]
        %v367 = vld [vmem:[#allocation6 + $0x170] sm:$0xff]
        %v368 = vld [vmem:[#allocation6 + $0x180] sm:$0xff]
        %v369 = vld [vmem:[#allocation6 + $0x188] sm:$0xff]
        %v370 = vld [vmem:[#allocation6 + $0x198] sm:$0xff]
        %v371 = vld [vmem:[#allocation6 + $0x1a0] sm:$0xff]
        %v372 = vld [vmem:[#allocation6 + $0x1b0] sm:$0xff]
        %v373 = vld [vmem:[#allocation6 + $0x1b8] sm:$0xff]
        %v374 = vld [vmem:[#allocation6 + $0x1c8] sm:$0xff]
        %v375 = vld [vmem:[#allocation6 + $0x1d0] sm:$0xff]
        %v376 = vld [vmem:[#allocation6 + $0x1e0] sm:$0xff]
        %v377 = vld [vmem:[#allocation6 + $0x1e8] sm:$0xff]
        %v378 = vld [vmem:[#allocation6 + $0x1f8] sm:$0xff]
        %v379 = vld [vmem:[#allocation6 + $0x200] sm:$0xff]
        %v380 = vld [vmem:[#allocation6 + $0x210] sm:$0xff]
        %v381 = vld [vmem:[#allocation6 + $0x218] sm:$0xff]
        %v382 = vld [vmem:[#allocation6 + $0x228] sm:$0xff]
        %v383 = vld [vmem:[#allocation6 + $0x230] sm:$0xff]
        %v384 = vld [vmem:[#allocation6 + $0x240] sm:$0xff]
        %v385 = vld [vmem:[#allocation6 + $0x248] sm:$0xff]
        %v386 = vld [vmem:[#allocation6 + $0x258] sm:$0xff]
        %v387 = vld [vmem:[#allocation6 + $0x260] sm:$0xff]
        %v388 = vld [vmem:[#allocation6 + $0x270] sm:$0xff]
        %v389 = vld [vmem:[#allocation6 + $0x278] sm:$0xff]
        %v390 = vld [vmem:[#allocation6 + $0x288] sm:$0xff]
        %v391 = vld [vmem:[#allocation6 + $0x290] sm:$0xff]
        %v392 = vld [vmem:[#allocation6 + $0x2a0] sm:$0xff]
        %v393 = vld [vmem:[#allocation6 + $0x2a8] sm:$0xff]
        %v394 = vld [vmem:[#allocation6 + $0x2b8] sm:$0xff]
        %v395 = vld [vmem:[#allocation6 + $0x2c0] sm:$0xff]
        %v396 = vld [vmem:[#allocation6 + $0x2d0] sm:$0xff]
        %v397 = vld [vmem:[#allocation6 + $0x2d8] sm:$0xff]
        %v398 = vld [vmem:[#allocation6 + $0x2e8] sm:$0xff]
        %v399 = vld [vmem:[#allocation6 + $0x2f0] sm:$0xff]
        %v400 = vld [vmem:[%s3 + $0x2] sm:$0x3]
        %v402 = vlaneseq
        %v403 = vshrl.u32 %v402, 7
        %v404 = vsub.s32 0, %v403
        %v405 = vrot.slane %v400, %v404
        %v406 = vlaneseq
        %v407 = vshrl.u32 %v406, 7
        %v408 = vsub.s32 1, %v407
        %v409 = vrot.slane %v400, %v408
        %412 = vmatprep.subr.mxu0 %v337
        %413 = vmatpush1.msra.mxu0 %v336
        %414 = vmatprep.subr.mxu0 %v339
        %415 = vmatpush1.msra.mxu0 %v338
        %416 = vmatprep.subr.mxu0 %v341
        %417 = vmatpush1.msra.mxu0 %v340
        %418 = vmatprep.subr.mxu0 %v343
        %419 = vmatpush1.msra.mxu0 %v342
        %420 = vmatprep.subr.mxu0 %v345
        %421 = vmatpush1.msra.mxu0 %v344
        %422 = vmatprep.subr.mxu0 %v347
        %423 = vmatpush1.msra.mxu0 %v346
        %424 = vmatprep.subr.mxu0 %v349
        %425 = vmatpush1.msra.mxu0 %v348
        %426 = vmatprep.subr.mxu0 %v351
        %427 = vmatpush1.msra.mxu0 %v350
        %428 = vmatprep.subr.mxu0 %v353
        %429 = vmatpush1.msra.mxu0 %v352
        %430 = vmatprep.subr.mxu0 %v355
        %431 = vmatpush1.msra.mxu0 %v354
        %432 = vmatprep.subr.mxu0 %v357
        %433 = vmatpush1.msra.mxu0 %v356
        %434 = vmatprep.subr.mxu0 %v359
        %435 = vmatpush1.msra.mxu0 %v358
        %436 = vmatprep.subr.mxu0 %v361
        %437 = vmatpush1.msra.mxu0 %v360
        %438 = vmatprep.subr.mxu0 %v363
        %439 = vmatpush1.msra.mxu0 %v362
        %440 = vmatprep.subr.mxu0 %v365
        %441 = vmatpush1.msra.mxu0 %v364
        %442 = vmatprep.subr.mxu0 %v367
        %443 = vmatpush1.msra.mxu0 %v366
        %444 = vmatprep.subr.mxu0 %v369
        %445 = vmatpush1.msra.mxu0 %v368
        %446 = vmatprep.subr.mxu0 %v371
        %447 = vmatpush1.msra.mxu0 %v370
        %448 = vmatprep.subr.mxu0 %v373
        %449 = vmatpush1.msra.mxu0 %v372
        %450 = vmatprep.subr.mxu0 %v375
        %451 = vmatpush1.msra.mxu0 %v374
        %452 = vmatprep.subr.mxu0 %v377
        %453 = vmatpush1.msra.mxu0 %v376
        %454 = vmatprep.subr.mxu0 %v379
        %455 = vmatpush1.msra.mxu0 %v378
        %456 = vmatprep.subr.mxu0 %v381
        %457 = vmatpush1.msra.mxu0 %v380
        %458 = vmatprep.subr.mxu0 %v383
        %459 = vmatpush1.msra.mxu0 %v382
        %460 = vmatprep.subr.mxu0 %v385
        %461 = vmatpush1.msra.mxu0 %v384
        %462 = vmatprep.subr.mxu0 %v387
        %463 = vmatpush1.msra.mxu0 %v386
        %464 = vmatprep.subr.mxu0 %v389
        %465 = vmatpush1.msra.mxu0 %v388
        %466 = vmatprep.subr.mxu0 %v391
        %467 = vmatpush1.msra.mxu0 %v390
        %468 = vmatprep.subr.mxu0 %v393
        %469 = vmatpush1.msra.mxu0 %v392
        %470 = vmatprep.subr.mxu0 %v395
        %471 = vmatpush1.msra.mxu0 %v394
        %472 = vmatprep.subr.mxu0 %v397
        %473 = vmatpush1.msra.mxu0 %v396
        %474 = vmatprep.subr.mxu0 %v399
        %475 = vmatpush1.msra.mxu0 %v398
        %476 = vmatprep.mubr.f32.mxu0 %v335
        %477 = vmatmul.mubr.f32.gmra.mrb[0].mxu0 %v334
        %v478 = vpop.f32.mrb[0].mxu0
        %v479 = vadd.f32 %v405, %v478
        %v480 = vpop.f32.mrb[0].mxu0
        %v481 = vadd.f32 %v409, %v480
        %482 = vdwg.mxu0
        %v483 = vmax.f32 %v479, 0.0
        %v484 = vmax.f32 %v481, 0.0
        %v485 = vld [vmem:[#allocation6 + $0x10] sm:$0xff]
        %v486 = vld [vmem:[#allocation6 + $0x28] sm:$0xff]
        %v487 = vld [vmem:[#allocation6 + $0x40] sm:$0xff]
        %v488 = vld [vmem:[#allocation6 + $0x58] sm:$0xff]
        %v489 = vld [vmem:[#allocation6 + $0x70] sm:$0xff]
        %v490 = vld [vmem:[#allocation6 + $0x88] sm:$0xff]
        %v491 = vld [vmem:[#allocation6 + $0xa0] sm:$0xff]
        %v492 = vld [vmem:[#allocation6 + $0xb8] sm:$0xff]
        %v493 = vld [vmem:[#allocation6 + $0xd0] sm:$0xff]
        %v494 = vld [vmem:[#allocation6 + $0xe8] sm:$0xff]
        %v495 = vld [vmem:[#allocation6 + $0x100] sm:$0xff]
        %v496 = vld [vmem:[#allocation6 + $0x118] sm:$0xff]
        %v497 = vld [vmem:[#allocation6 + $0x130] sm:$0xff]
        %v498 = vld [vmem:[#allocation6 + $0x148] sm:$0xff]
        %v499 = vld [vmem:[#allocation6 + $0x160] sm:$0xff]
        %v500 = vld [vmem:[#allocation6 + $0x178] sm:$0xff]
        %v501 = vld [vmem:[#allocation6 + $0x190] sm:$0xff]
        %v502 = vld [vmem:[#allocation6 + $0x1a8] sm:$0xff]
        %v503 = vld [vmem:[#allocation6 + $0x1c0] sm:$0xff]
        %v504 = vld [vmem:[#allocation6 + $0x1d8] sm:$0xff]
        %v505 = vld [vmem:[#allocation6 + $0x1f0] sm:$0xff]
        %v506 = vld [vmem:[#allocation6 + $0x208] sm:$0xff]
        %v507 = vld [vmem:[#allocation6 + $0x220] sm:$0xff]
        %v508 = vld [vmem:[#allocation6 + $0x238] sm:$0xff]
        %v509 = vld [vmem:[#allocation6 + $0x250] sm:$0xff]
        %v510 = vld [vmem:[#allocation6 + $0x268] sm:$0xff]
        %v511 = vld [vmem:[#allocation6 + $0x280] sm:$0xff]
        %v512 = vld [vmem:[#allocation6 + $0x298] sm:$0xff]
        %v513 = vld [vmem:[#allocation6 + $0x2b0] sm:$0xff]
        %v514 = vld [vmem:[#allocation6 + $0x2c8] sm:$0xff]
        %v515 = vld [vmem:[#allocation6 + $0x2e0] sm:$0xff]
        %v516 = vld [vmem:[#allocation6 + $0x2f8] sm:$0xff]
        %v517 = vld [vmem:[%s3 + $0x4] sm:$0x1]
        %v519 = vlaneseq
        %v520 = vshrl.u32 %v519, 7
        %v521 = vsub.s32 0, %v520
        %v522 = vrot.slane %v517, %v521
        %524 = vmatprep.subr.mxu0 0.0
        %525 = vmatpush1.msra.mxu0 %v485
        %526 = vmatprep.subr.mxu0 0.0
        %527 = vmatpush1.msra.mxu0 %v486
        %528 = vmatprep.subr.mxu0 0.0
        %529 = vmatpush1.msra.mxu0 %v487
        %530 = vmatprep.subr.mxu0 0.0
        %531 = vmatpush1.msra.mxu0 %v488
        %532 = vmatprep.subr.mxu0 0.0
        %533 = vmatpush1.msra.mxu0 %v489
        %534 = vmatprep.subr.mxu0 0.0
        %535 = vmatpush1.msra.mxu0 %v490
        %536 = vmatprep.subr.mxu0 0.0
        %537 = vmatpush1.msra.mxu0 %v491
        %538 = vmatprep.subr.mxu0 0.0
        %539 = vmatpush1.msra.mxu0 %v492
        %540 = vmatprep.subr.mxu0 0.0
        %541 = vmatpush1.msra.mxu0 %v493
        %542 = vmatprep.subr.mxu0 0.0
        %543 = vmatpush1.msra.mxu0 %v494
        %544 = vmatprep.subr.mxu0 0.0
        %545 = vmatpush1.msra.mxu0 %v495
        %546 = vmatprep.subr.mxu0 0.0
        %547 = vmatpush1.msra.mxu0 %v496
        %548 = vmatprep.subr.mxu0 0.0
        %549 = vmatpush1.msra.mxu0 %v497
        %550 = vmatprep.subr.mxu0 0.0
        %551 = vmatpush1.msra.mxu0 %v498
        %552 = vmatprep.subr.mxu0 0.0
        %553 = vmatpush1.msra.mxu0 %v499
        %554 = vmatprep.subr.mxu0 0.0
        %555 = vmatpush1.msra.mxu0 %v500
        %556 = vmatprep.subr.mxu0 0.0
        %557 = vmatpush1.msra.mxu0 %v501
        %558 = vmatprep.subr.mxu0 0.0
        %559 = vmatpush1.msra.mxu0 %v502
        %560 = vmatprep.subr.mxu0 0.0
        %561 = vmatpush1.msra.mxu0 %v503
        %562 = vmatprep.subr.mxu0 0.0
        %563 = vmatpush1.msra.mxu0 %v504
        %564 = vmatprep.subr.mxu0 0.0
        %565 = vmatpush1.msra.mxu0 %v505
        %566 = vmatprep.subr.mxu0 0.0
        %567 = vmatpush1.msra.mxu0 %v506
        %568 = vmatprep.subr.mxu0 0.0
        %569 = vmatpush1.msra.mxu0 %v507
        %570 = vmatprep.subr.mxu0 0.0
        %571 = vmatpush1.msra.mxu0 %v508
        %572 = vmatprep.subr.mxu0 0.0
        %573 = vmatpush1.msra.mxu0 %v509
        %574 = vmatprep.subr.mxu0 0.0
        %575 = vmatpush1.msra.mxu0 %v510
        %576 = vmatprep.subr.mxu0 0.0
        %577 = vmatpush1.msra.mxu0 %v511
        %578 = vmatprep.subr.mxu0 0.0
        %579 = vmatpush1.msra.mxu0 %v512
        %580 = vmatprep.subr.mxu0 0.0
        %581 = vmatpush1.msra.mxu0 %v513
        %582 = vmatprep.subr.mxu0 0.0
        %583 = vmatpush1.msra.mxu0 %v514
        %584 = vmatprep.subr.mxu0 0.0
        %585 = vmatpush1.msra.mxu0 %v515
        %586 = vmatprep.subr.mxu0 0.0
        %587 = vmatpush1.msra.mxu0 %v516
        %588 = vmatprep.mubr.f32.mxu0 %v484
        %589 = vmatmul.mubr.f32.gmra.mrb[0].mxu0 %v483
        %v590 = vpop.f32.mrb[0].mxu0
        %v591 = vadd.f32 %v522, %v590
        %v592 = vpop.f32.mrb[0].mxu0
        %593 = vdwg.mxu0
        %v594 = vtanh.pop %v591
        %v595 = vmul.f32 %v594, 2.0
        %596 = vst [vmem:[%s241] sm:$0xff] %v595
        %p597 = scmp.lt.s32.totalorder %s19, 1
        %s598 = scalar_select %p597, %s19, 1
        %s599 = smul.addr %s598, 8
        %s600 = scalar_lea.vmem %s4, %s599
        // Predicated region
        $region49: #{_lambda_.1} parent=35 // pred_check
          %p601 = pneg %p126
        $region50: #{_lambda_.1} parent=35 // pred_check_branch
          %603 = sbr.rel (%p601) target = $region52
        $region51: #{_lambda_.1} parent=35 // pred_region
          _
        $region52: #{_lambda_.1} parent=35 // pred_fallthru
          _
      $region36: #{_lambda_.1} parent=5 // pred_fallthru
        _
      %p604 = scmp.le.s32.totalorder 2, %s14
      // Predicated region
      $region53: #{_lambda_.1} parent=5 // pred_check
        %p605 = pneg %p604
      $region54: #{_lambda_.1} parent=5 // pred_check_branch
        %607 = sbr.rel (%p605) target = $region56
      $region55: #{_lambda_.1} parent=5 // pred_region
        %s608 = ssub.s32 %s14, 2
        // Predicated region
        $region57: #{_lambda_.1} parent=55 // pred_check
          %p609 = pneg %p132
        $region58: #{_lambda_.1} parent=55 // pred_check_branch
          %611 = sbr.rel (%p609) target = $region60
        $region59: #{_lambda_.1} parent=55 // pred_region
          %p612 = scmp.lt.s32.totalorder %s20, 1
          %s613 = scalar_select %p612, %s20, 1
          %s614 = smul.addr %s613, 8
          %s615 = scalar_lea.vmem %s4, %s614
        $region60: #{_lambda_.1} parent=55 // pred_fallthru
          _
      $region56: #{_lambda_.1} parent=5 // pred_fallthru
        _
    $region6: #{_lambda_.1} parent=1 // loop_footer
      %s18 = sadd.s32 1, %s14
    $region7: #{_lambda_.1} parent=1 // loop_footer_branch
      %13 = sbr.rel target = $region3
    $region8: #{_lambda_.1} parent=1 // loop_exit
      _
    %616 = vsyncpa [#allocation3], 1
    %s617 = scalar_lea.sflag [#allocation3], 1
    %618 = vsyncpa %s617, 1
    %619 = vsyncpa [#allocation5], 1

</llo_original>
